<compile_context>
chip_gen: v5e
topology: v5e:2x2
jax: 0.10.0
libtpu: 0.0.40
codegen_flags: <defaults>
</compile_context>

<pallas_src>
import jax
import jax.numpy as jnp
import numpy as np
from jax.experimental import pallas as pl
from jax.experimental.pallas import tpu as pltpu

FRAME = 128        # synthetic "patch" size in audio samples
BEATS_DIM = 32     # synthetic encoder hidden dim (stand-in for BEATs' 768)
TARGET_DIM = 128   # projection target dim (stand-in for RoBERTa-large's 1024)


def beats_kernel(frames_ref, w_emb_ref, w_proj_ref, b_proj_ref, out_ref):
    """One grid step == one tile of `bt` audio clips (bt*S frame rows).

    frames_ref : (bt*S, FRAME)  f32   framed audio rows for this tile
    w_emb_ref  : (FRAME, D)     bf16  synthetic patch-embed weight (resident)
    w_proj_ref : (D, T)         f32   projection weight, pre-scaled by 1/S
    b_proj_ref : (1, T)         f32   projection bias
    out_ref    : (bt, T)        f32   output embedding rows for this tile
    """
    bt = out_ref.shape[0]
    rows = frames_ref.shape[0]
    S = rows // bt

    # Frames arrive as f32 (no wrapper-side cast pass over HBM); cast to bf16
    # in-VMEM right before the MXU matmul — the VPU cast hides under DMA.
    frames = frames_ref[...].astype(jnp.bfloat16)

    # Synthetic "extract_features": (rows,128)@(128,D) on the MXU + GELU.
    hidden = jnp.dot(frames, w_emb_ref[...],
                     preferred_element_type=jnp.float32)          # (rows, D) f32
    # TODO(synk): real BEATs uses exact-erf GELU; tanh approximation kept here
    # (reference below uses the same) for a guaranteed Mosaic lowering.
    hidden = jax.nn.gelu(hidden, approximate=True)

    # Per-sample sum over the sequence axis; the mean's 1/S is folded into
    # w_proj on the host (S is a multiple of 8, so the reshape is layout-free).
    emb = hidden.reshape(bt, S, hidden.shape[-1]).sum(axis=1)     # (bt, D) f32

    # Tiny projection GEMM kept fully in f32 for tighter numerics.
    out = jnp.dot(emb, w_proj_ref[...],
                  preferred_element_type=jnp.float32)             # (bt, T) f32
    out_ref[...] = (out + b_proj_ref[...]).astype(out_ref.dtype)


def _choose_tiling(B, S):
    """Pick (samples-per-tile, n_tiles).  Frame stream is f32 (4 B/elem)."""
    bytes_per_sample = S * FRAME * 4
    budget = 2 * 1024 * 1024                 # ~2 MiB of frames per grid step
    bt_budget = max(1, budget // max(bytes_per_sample, 1))
    if B <= bt_budget:
        return B, 1                          # one tile; block == full array
    bt = max(8, (bt_budget // 8) * 8)        # multiple of 8 -> lane-dense out block
    for cand in range(bt, 7, -8):            # prefer a divisor of B (no tail pad)
        if B % cand == 0:
            return cand, B // cand
    return bt, -(-B // bt)                   # fall back to padding the tail


def beats_wrapper_forward(x, w_emb, w_proj, b_proj, *, block_batch=None):
    """x: (B, L) or (L,) float32 audio in [-1, 1]. Returns (B, TARGET_DIM) f32."""
    if x.ndim == 1:
        x = x[None, :]
    B, L = x.shape
    S = L // FRAME
    frames = x[:, : S * FRAME].reshape(B, S, FRAME).astype(jnp.float32)

    # Keep S a multiple of 8 so the in-kernel (bt,S,D) reshape / sequence-sum
    # stays on (8,128) tiles.  Zero frames contribute gelu(0)=0 to the sum and
    # the true 1/S is folded into w_proj, so the mean is unchanged.
    S_pad = -(-S // 8) * 8
    if S_pad != S:
        frames = jnp.pad(frames, ((0, 0), (0, S_pad - S), (0, 0)))

    if block_batch is None:
        bt, n_tiles = _choose_tiling(B, S_pad)
    else:
        # Validate caller-supplied tile: multiple of 8 unless it covers the batch.
        if block_batch >= B:
            bt, n_tiles = B, 1
        else:
            bt = max(8, -(-block_batch // 8) * 8)
            n_tiles = -(-B // bt)
    B_pad = n_tiles * bt
    if B_pad != B:
        # TODO(synk): ragged last tile — only reached when no multiple-of-8
        # tile within the byte budget divides B.
        frames = jnp.pad(frames, ((0, B_pad - B), (0, 0), (0, 0)))

    # Host-side prep: flatten to lane-dense rows (no dtype-cast pass over the
    # heavy stream), fold the sequence-mean's 1/S into the f32 projection.
    frames2d = frames.reshape(B_pad * S_pad, FRAME)                 # f32
    w_emb_b = w_emb.astype(jnp.bfloat16)                            # 8 KiB
    w_proj_s = w_proj.astype(jnp.float32) / jnp.float32(S)          # 16 KiB f32
    b_proj_f = b_proj.astype(jnp.float32).reshape(1, TARGET_DIM)

    rows_per_tile = bt * S_pad
    out = pl.pallas_call(
        beats_kernel,
        out_shape=jax.ShapeDtypeStruct((B_pad, TARGET_DIM), jnp.float32),
        grid=(n_tiles,),
        in_specs=[
            pl.BlockSpec((rows_per_tile, FRAME), lambda b: (b, 0)),
            # Small weights: full-array blocks with constant index maps —
            # DMA'd once, resident for the whole grid.
            pl.BlockSpec((FRAME, BEATS_DIM), lambda b: (0, 0)),
            pl.BlockSpec((BEATS_DIM, TARGET_DIM), lambda b: (0, 0)),
            pl.BlockSpec((1, TARGET_DIM), lambda b: (0, 0)),
        ],
        out_specs=pl.BlockSpec((bt, TARGET_DIM), lambda b: (b, 0)),
        compiler_params=pltpu.CompilerParams(
            # Typically a single tile (mem-bound, 1 TC on v5e/v6e); when the
            # batch forces multiple tiles, "parallel" lets v7x shard them.
            dimension_semantics=("parallel",),
        ),
    )(frames2d, w_emb_b, w_proj_s, b_proj_f)

    return out[:B]


def beats_wrapper_ref(x, w_emb, w_proj, b_proj):
    """Pure-JAX f32 reference of the same forward (for correctness check)."""
    if x.ndim == 1:
        x = x[None, :]
    B, L = x.shape
    S = L // FRAME
    frames = x[:, : S * FRAME].reshape(B, S, FRAME).astype(jnp.float32)
    hidden = jax.nn.gelu(jnp.einsum("bsf,fd->bsd", frames, w_emb),
                         approximate=True)
    emb = hidden.mean(axis=1)                       # (B, D)
    return emb @ w_proj + b_proj.reshape(-1)        # (B, T)


if __name__ == "__main__":
    key = jax.random.PRNGKey(0)
    k_x, k_we, k_wp, k_bp = jax.random.split(key, 4)

    B = 16
    L = FRAME * 8   # 8 "frames" per clip -> S = 8
    x = jax.random.uniform(k_x, (B, L), dtype=jnp.float32, minval=-1.0, maxval=1.0)

    # Deterministic parameter init (synthetic; shapes implied by the module).
    w_emb = jax.random.normal(k_we, (FRAME, BEATS_DIM), jnp.float32) * (1.0 / np.sqrt(FRAME))
    w_proj = jax.random.normal(k_wp, (BEATS_DIM, TARGET_DIM), jnp.float32) * (1.0 / np.sqrt(BEATS_DIM))
    b_proj = jax.random.normal(k_bp, (1, TARGET_DIM), jnp.float32) * 0.01

    out = jax.block_until_ready(beats_wrapper_forward(x, w_emb, w_proj, b_proj))
    ref = jax.block_until_ready(beats_wrapper_ref(x, w_emb, w_proj, b_proj))

    # bf16 only on the first matmul's operands (f32 accumulation, f32 projection).
    np.testing.assert_allclose(np.asarray(out), np.asarray(ref), rtol=1e-2, atol=1e-2)
    assert out.shape == (B, TARGET_DIM)

    print("KERNEL_OK")
</pallas_src>

<mosaic_0001>
module attributes {stable_mosaic.version = 11 : i64} {
  func.func @beats_kernel(%arg0: i32, %arg1: memref<128x128xf32, #tpu.memory_space<vmem>>, %arg2: memref<128x32xbf16, #tpu.memory_space<vmem>>, %arg3: memref<32x128xf32, #tpu.memory_space<vmem>>, %arg4: memref<1x128xf32, #tpu.memory_space<vmem>>, %arg5: memref<16x128xf32, #tpu.memory_space<vmem>>) attributes {dimension_semantics = [#tpu.dimension_semantics<parallel>], iteration_bounds = array<i64: 1>, scalar_prefetch = 0 : i64, scratch_operands = 0 : i64, tpu.core_type = #tpu.core_type<tc>, window_params = [{transform_indices = @transform_0, window_bounds = array<i64: 128, 128>}, {pipeline_mode = #tpu.pipeline_mode<synchronous>, transform_indices = @transform_1, window_bounds = array<i64: 128, 32>}, {pipeline_mode = #tpu.pipeline_mode<synchronous>, transform_indices = @transform_2, window_bounds = array<i64: 32, 128>}, {pipeline_mode = #tpu.pipeline_mode<synchronous>, transform_indices = @transform_3, window_bounds = array<i64: 1, 128>}, {transform_indices = @transform_4, window_bounds = array<i64: 16, 128>}]} {
    %c0 = arith.constant 0 : index
    %c0_0 = arith.constant 0 : index
    %0 = vector.load %arg1[%c0, %c0_0] : memref<128x128xf32, #tpu.memory_space<vmem>>, vector<128x128xf32>
    %1 = arith.truncf %0 : vector<128x128xf32> to vector<128x128xbf16>
    %c0_1 = arith.constant 0 : index
    %c0_2 = arith.constant 0 : index
    %2 = vector.load %arg2[%c0_1, %c0_2] : memref<128x32xbf16, #tpu.memory_space<vmem>>, vector<128x32xbf16>
    %cst = arith.constant dense<0.000000e+00> : vector<128x32xf32>
    %3 = tpu.matmul %1, %2, %cst {dimension_numbers = #tpu.dot_dimension_numbers<[1], [0], [0], [1], [0, 0, 1, 1], [], []>} : vector<128x128xbf16>, vector<128x32xbf16>, vector<128x32xf32> -> vector<128x32xf32>
    %4 = arith.mulf %3, %3 : vector<128x32xf32>
    %5 = arith.mulf %3, %4 : vector<128x32xf32>
    %cst_3 = arith.constant 4.471500e-02 : f32
    %6 = vector.broadcast %cst_3 : f32 to vector<128x32xf32>
    %7 = arith.mulf %6, %5 : vector<128x32xf32>
    %8 = arith.addf %3, %7 : vector<128x32xf32>
    %cst_4 = arith.constant 0.797884583 : f32
    %9 = vector.broadcast %cst_4 : f32 to vector<128x32xf32>
    %10 = arith.mulf %9, %8 : vector<128x32xf32>
    %11 = math.tanh %10 : vector<128x32xf32>
    %cst_5 = arith.constant 1.000000e+00 : f32
    %12 = vector.broadcast %cst_5 : f32 to vector<128x32xf32>
    %13 = arith.addf %12, %11 : vector<128x32xf32>
    %cst_6 = arith.constant 5.000000e-01 : f32
    %14 = vector.broadcast %cst_6 : f32 to vector<128x32xf32>
    %15 = arith.mulf %14, %13 : vector<128x32xf32>
    %16 = arith.mulf %3, %15 : vector<128x32xf32>
    %17 = vector.shape_cast %16 : vector<128x32xf32> to vector<16x8x32xf32>
    %cst_7 = arith.constant dense<0.000000e+00> : vector<16x32xf32>
    %18 = vector.multi_reduction <add>, %17, %cst_7 [1] : vector<16x8x32xf32> to vector<16x32xf32>
    %c0_8 = arith.constant 0 : index
    %c0_9 = arith.constant 0 : index
    %19 = vector.load %arg3[%c0_8, %c0_9] : memref<32x128xf32, #tpu.memory_space<vmem>>, vector<32x128xf32>
    %cst_10 = arith.constant dense<0.000000e+00> : vector<16x128xf32>
    %20 = tpu.matmul %18, %19, %cst_10 {dimension_numbers = #tpu.dot_dimension_numbers<[1], [0], [0], [1], [0, 0, 1, 1], [], []>} : vector<16x32xf32>, vector<32x128xf32>, vector<16x128xf32> -> vector<16x128xf32>
    %c0_11 = arith.constant 0 : index
    %c0_12 = arith.constant 0 : index
    %21 = vector.load %arg4[%c0_11, %c0_12] : memref<1x128xf32, #tpu.memory_space<vmem>>, vector<1x128xf32>
    %22 = vector.broadcast %21 : vector<1x128xf32> to vector<16x128xf32>
    %23 = arith.addf %20, %22 : vector<16x128xf32>
    %c0_13 = arith.constant 0 : index
    %c0_14 = arith.constant 0 : index
    %24 = vector.load %arg5[%c0_13, %c0_14] : memref<16x128xf32, #tpu.memory_space<vmem>>, vector<16x128xf32>
    tpu.vector_store %arg5[%c0_13, %c0_14], %23 {strides = array<i32>} : memref<16x128xf32, #tpu.memory_space<vmem>>, vector<16x128xf32>,
    return
  }
  func.func @transform_0(%arg0: i32) -> (i32, i32) {
    %c0_i32 = arith.constant 0 : i32
    %c0_i32_0 = arith.constant 0 : i32
    return %arg0, %c0_i32 : i32, i32
  }
  func.func @transform_1(%arg0: i32) -> (i32, i32) {
    %c0_i32 = arith.constant 0 : i32
    %c0_i32_0 = arith.constant 0 : i32
    %c0_i32_1 = arith.constant 0 : i32
    return %c0_i32, %c0_i32_0 : i32, i32
  }
  func.func @transform_2(%arg0: i32) -> (i32, i32) {
    %c0_i32 = arith.constant 0 : i32
    %c0_i32_0 = arith.constant 0 : i32
    %c0_i32_1 = arith.constant 0 : i32
    return %c0_i32, %c0_i32_0 : i32, i32
  }
  func.func @transform_3(%arg0: i32) -> (i32, i32) {
    %c0_i32 = arith.constant 0 : i32
    %c0_i32_0 = arith.constant 0 : i32
    %c0_i32_1 = arith.constant 0 : i32
    return %c0_i32, %c0_i32_0 : i32, i32
  }
  func.func @transform_4(%arg0: i32) -> (i32, i32) {
    %c0_i32 = arith.constant 0 : i32
    %c0_i32_0 = arith.constant 0 : i32
    return %arg0, %c0_i32 : i32, i32
  }
}

</mosaic_0001>

<llo_original>
// kernel: tpu_custom_call.1
$region0: #{tpu_custom_call.1}
  #allocation0 [shape = 'u32[]', space=smem, size = 0x4, offset = 0x4, fixed_abs, tag = 'smem constant byte address 0x4 - core index']
  #allocation1 [shape = 'u32[72,128]{1,0:T(1,128)}', space=vmem, size = 0x9000, scoped, tag = 'internal scratch']
  %s0 = inlined_call_operand.hbm [shape: f32[128,128], index: 0, kind: input, shape index: {}]
  %s1 = inlined_call_operand.vmem [shape: bf16[128,32], index: 1, kind: input, shape index: {}]
  %s2 = inlined_call_operand.vmem [shape: f32[32,128], index: 2, kind: input, shape index: {}]
  %s3 = inlined_call_operand.vmem [shape: f32[1,128], index: 3, kind: input, shape index: {}]
  %s4 = inlined_call_operand.hbm [shape: f32[16,128], index: 4, kind: output, shape index: {}]
  %s5 = sld [smem:[#allocation0]]
  $region30: #{tpu_custom_call.1} parent=0
    _
  %s7 = ssub.s32 1, %s5
  %s8 = scalar_select 0, %s7, %s5
  $region1: #{tpu_custom_call.1} parent=0
    #allocation2 [shape = 'u8[65536]{0}', space=vmem, size = 0x10000, scoped, tag = 'input window, operand 0, single buffered']
    #allocation3 [shape = 's32[1]{0}', space=sflag, size = 0x4, scoped, tag = 'scoped memory for tpu_custom_call.1']
    #allocation4 [shape = 's32[1]{0}', space=sflag, size = 0x4, scoped, tag = 'scoped memory for tpu_custom_call.1']
    #allocation5 [shape = 'u8[8192]{0}', space=vmem, size = 0x2000, scoped, tag = 'output window, operand 0, single buffered']
    %9 = vsyncpa [#allocation3], 0
    %10 = vsyncpa [#allocation4], 0
    // Predicated region
    $region2: #{tpu_custom_call.1} parent=1 // pred_check
      _
    $region3: #{tpu_custom_call.1} parent=1 // pred_check_branch
      %12 = sbr.rel (0) target = $region5
    $region4: #{tpu_custom_call.1} parent=1 // pred_region
      %14 = vsyncadd [#allocation3], 0
      %s15 = sshll.u32 %s0, 4
      %s16 = int_to_ptr.hbm [resolvable:$true] %s15
      %s17 = sshll.u32 [#allocation2], 4
      %s18 = int_to_ptr.vmem [resolvable:$true] %s17
      %23 = dma.hbm_to_vmem [thread:$0]  %s16, 2048, %s18, [#allocation3], 128, 128, 8
    $region5: #{tpu_custom_call.1} parent=1 // pred_fallthru
      _
    // Predicated region
    $region6: #{tpu_custom_call.1} parent=1 // pred_check
      _
    $region7: #{tpu_custom_call.1} parent=1 // pred_check_branch
      %25 = sbr.rel (0) target = $region9
    $region8: #{tpu_custom_call.1} parent=1 // pred_region
      _
    $region9: #{tpu_custom_call.1} parent=1 // pred_fallthru
      _
    // Predicated region
    $region10: #{tpu_custom_call.1} parent=1 // pred_check
      _
    $region11: #{tpu_custom_call.1} parent=1 // pred_check_branch
      %27 = sbr.rel (0) target = $region13
    $region12: #{tpu_custom_call.1} parent=1 // pred_region
      _
    $region13: #{tpu_custom_call.1} parent=1 // pred_fallthru
      _
    // Predicated region
    $region14: #{tpu_custom_call.1} parent=1 // pred_check
      _
    $region15: #{tpu_custom_call.1} parent=1 // pred_check_branch
      %29 = sbr.rel (0) target = $region17
    $region16: #{tpu_custom_call.1} parent=1 // pred_region
      _
    $region17: #{tpu_custom_call.1} parent=1 // pred_fallthru
      _
    // Predicated region
    $region18: #{tpu_custom_call.1} parent=1 // pred_check
      _
    $region19: #{tpu_custom_call.1} parent=1 // pred_check_branch
      %31 = sbr.rel (0) target = $region21
    $region20: #{tpu_custom_call.1} parent=1 // pred_region
      %33 = dma.done [#allocation3], 2048
    $region21: #{tpu_custom_call.1} parent=1 // pred_fallthru
      _
    %v34 = vld [vmem:[#allocation2] sm:$0xff]
    %v35 = vld [vmem:[#allocation2 + $0x8] sm:$0xff]
    %v36 = vld [vmem:[#allocation2 + $0x10] sm:$0xff]
    %v37 = vld [vmem:[#allocation2 + $0x18] sm:$0xff]
    %v38 = vld [vmem:[#allocation2 + $0x20] sm:$0xff]
    %v39 = vld [vmem:[#allocation2 + $0x28] sm:$0xff]
    %v40 = vld [vmem:[#allocation2 + $0x30] sm:$0xff]
    %v41 = vld [vmem:[#allocation2 + $0x38] sm:$0xff]
    %v42 = vld [vmem:[#allocation2 + $0x40] sm:$0xff]
    %v43 = vld [vmem:[#allocation2 + $0x48] sm:$0xff]
    %v44 = vld [vmem:[#allocation2 + $0x50] sm:$0xff]
    %v45 = vld [vmem:[#allocation2 + $0x58] sm:$0xff]
    %v46 = vld [vmem:[#allocation2 + $0x60] sm:$0xff]
    %v47 = vld [vmem:[#allocation2 + $0x68] sm:$0xff]
    %v48 = vld [vmem:[#allocation2 + $0x70] sm:$0xff]
    %v49 = vld [vmem:[#allocation2 + $0x78] sm:$0xff]
    %v50 = vpack.c.bf16 %v35, %v34
    %v51 = vpack.c.bf16 %v37, %v36
    %v52 = vpack.c.bf16 %v39, %v38
    %v53 = vpack.c.bf16 %v41, %v40
    %v54 = vpack.c.bf16 %v43, %v42
    %v55 = vpack.c.bf16 %v45, %v44
    %v56 = vpack.c.bf16 %v47, %v46
    %v57 = vpack.c.bf16 %v49, %v48
    %v58 = vld [vmem:[%s1] sm:$0xf]
    %v59 = vld [vmem:[%s1 + $0x4] sm:$0xf]
    %v60 = vld [vmem:[%s1 + $0x8] sm:$0xf]
    %v61 = vld [vmem:[%s1 + $0xc] sm:$0xf]
    %v62 = vld [vmem:[%s1 + $0x10] sm:$0xf]
    %v63 = vld [vmem:[%s1 + $0x14] sm:$0xf]
    %v64 = vld [vmem:[%s1 + $0x18] sm:$0xf]
    %v65 = vld [vmem:[%s1 + $0x1c] sm:$0xf]
    %v66 = vld [vmem:[%s1 + $0x20] sm:$0xf]
    %v67 = vld [vmem:[%s1 + $0x24] sm:$0xf]
    %v68 = vld [vmem:[%s1 + $0x28] sm:$0xf]
    %v69 = vld [vmem:[%s1 + $0x2c] sm:$0xf]
    %v70 = vld [vmem:[%s1 + $0x30] sm:$0xf]
    %v71 = vld [vmem:[%s1 + $0x34] sm:$0xf]
    %v72 = vld [vmem:[%s1 + $0x38] sm:$0xf]
    %v73 = vld [vmem:[%s1 + $0x3c] sm:$0xf]
    %v90 = vunpack.c.l.b16 %v58
    %v91 = vunpack.c.l.b16 %v59
    %v92 = vunpack.c.l.b16 %v60
    %v93 = vunpack.c.l.b16 %v61
    %v94 = vunpack.c.l.b16 %v62
    %v95 = vunpack.c.l.b16 %v63
    %v96 = vunpack.c.l.b16 %v64
    %v97 = vunpack.c.l.b16 %v65
    %v98 = vunpack.c.l.b16 %v66
    %v99 = vunpack.c.l.b16 %v67
    %v100 = vunpack.c.l.b16 %v68
    %v101 = vunpack.c.l.b16 %v69
    %v102 = vunpack.c.l.b16 %v70
    %v103 = vunpack.c.l.b16 %v71
    %v104 = vunpack.c.l.b16 %v72
    %v105 = vunpack.c.l.b16 %v73
    %v106 = vpack.c.b16 %v91, %v90
    %v107 = vpack.c.b16 %v93, %v92
    %v108 = vpack.c.b16 %v95, %v94
    %v109 = vpack.c.b16 %v97, %v96
    %v110 = vpack.c.b16 %v99, %v98
    %v111 = vpack.c.b16 %v101, %v100
    %v112 = vpack.c.b16 %v103, %v102
    %v113 = vpack.c.b16 %v105, %v104
    %122 = vmatpush.bf16.msra.mxu0 %v113
    %123 = vmatpush.bf16.msra.mxu0 %v112
    %124 = vmatpush.bf16.msra.mxu0 %v111
    %125 = vmatpush.bf16.msra.mxu0 %v110
    %126 = vmatpush.bf16.msra.mxu0 %v109
    %127 = vmatpush.bf16.msra.mxu0 %v108
    %128 = vmatpush.bf16.msra.mxu0 %v107
    %129 = vmatpush.bf16.msra.mxu0 %v106
    %130 = vmatmul.bf16.gmra.mxu0 %v50
    %v131 = vpop.f32.mrf.mxu0
    %v132 = vadd.f32 0.0, %v131
    %v133 = vpop.f32.mrf.mxu0
    %v134 = vadd.f32 0.0, %v133
    %135 = vmatmul.bf16.gmra.mxu0 %v51
    %v136 = vpop.f32.mrf.mxu0
    %v137 = vadd.f32 0.0, %v136
    %v138 = vpop.f32.mrf.mxu0
    %v139 = vadd.f32 0.0, %v138
    %140 = vmatmul.bf16.gmra.mxu0 %v52
    %v141 = vpop.f32.mrf.mxu0
    %v142 = vadd.f32 0.0, %v141
    %v143 = vpop.f32.mrf.mxu0
    %v144 = vadd.f32 0.0, %v143
    %145 = vmatmul.bf16.gmra.mxu0 %v53
    %v146 = vpop.f32.mrf.mxu0
    %v147 = vadd.f32 0.0, %v146
    %v148 = vpop.f32.mrf.mxu0
    %v149 = vadd.f32 0.0, %v148
    %150 = vmatmul.bf16.gmra.mxu0 %v54
    %v151 = vpop.f32.mrf.mxu0
    %v152 = vadd.f32 0.0, %v151
    %v153 = vpop.f32.mrf.mxu0
    %v154 = vadd.f32 0.0, %v153
    %155 = vmatmul.bf16.gmra.mxu0 %v55
    %v156 = vpop.f32.mrf.mxu0
    %v157 = vadd.f32 0.0, %v156
    %v158 = vpop.f32.mrf.mxu0
    %v159 = vadd.f32 0.0, %v158
    %160 = vmatmul.bf16.gmra.mxu0 %v56
    %v161 = vpop.f32.mrf.mxu0
    %v162 = vadd.f32 0.0, %v161
    %v163 = vpop.f32.mrf.mxu0
    %v164 = vadd.f32 0.0, %v163
    %165 = vmatmul.bf16.gmra.mxu0 %v57
    %v166 = vpop.f32.mrf.mxu0
    %v167 = vadd.f32 0.0, %v166
    %v168 = vpop.f32.mrf.mxu0
    %v169 = vadd.f32 0.0, %v168
    %170 = vdwg.mxu0
    %v171 = vmul.f32 %v132, %v132
    %v172 = vmul.f32 %v134, %v134
    %v173 = vmul.f32 %v137, %v137
    %v174 = vmul.f32 %v139, %v139
    %v175 = vmul.f32 %v142, %v142
    %v176 = vmul.f32 %v144, %v144
    %v177 = vmul.f32 %v147, %v147
    %v178 = vmul.f32 %v149, %v149
    %v179 = vmul.f32 %v152, %v152
    %v180 = vmul.f32 %v154, %v154
    %v181 = vmul.f32 %v157, %v157
    %v182 = vmul.f32 %v159, %v159
    %v183 = vmul.f32 %v162, %v162
    %v184 = vmul.f32 %v164, %v164
    %v185 = vmul.f32 %v167, %v167
    %v186 = vmul.f32 %v169, %v169
    %v187 = vmul.f32 %v132, %v171
    %v188 = vmul.f32 %v134, %v172
    %v189 = vmul.f32 %v137, %v173
    %v190 = vmul.f32 %v139, %v174
    %v191 = vmul.f32 %v142, %v175
    %v192 = vmul.f32 %v144, %v176
    %v193 = vmul.f32 %v147, %v177
    %v194 = vmul.f32 %v149, %v178
    %v195 = vmul.f32 %v152, %v179
    %v196 = vmul.f32 %v154, %v180
    %v197 = vmul.f32 %v157, %v181
    %v198 = vmul.f32 %v159, %v182
    %v199 = vmul.f32 %v162, %v183
    %v200 = vmul.f32 %v164, %v184
    %v201 = vmul.f32 %v167, %v185
    %v202 = vmul.f32 %v169, %v186
    %v203 = vmul.f32 %v187, 0.044715
    %v204 = vmul.f32 %v188, 0.044715
    %v205 = vmul.f32 %v189, 0.044715
    %v206 = vmul.f32 %v190, 0.044715
    %v207 = vmul.f32 %v191, 0.044715
    %v208 = vmul.f32 %v192, 0.044715
    %v209 = vmul.f32 %v193, 0.044715
    %v210 = vmul.f32 %v194, 0.044715
    %v211 = vmul.f32 %v195, 0.044715
    %v212 = vmul.f32 %v196, 0.044715
    %v213 = vmul.f32 %v197, 0.044715
    %v214 = vmul.f32 %v198, 0.044715
    %v215 = vmul.f32 %v199, 0.044715
    %v216 = vmul.f32 %v200, 0.044715
    %v217 = vmul.f32 %v201, 0.044715
    %v218 = vmul.f32 %v202, 0.044715
    %v219 = vadd.f32 %v132, %v203
    %v220 = vadd.f32 %v134, %v204
    %v221 = vadd.f32 %v137, %v205
    %v222 = vadd.f32 %v139, %v206
    %v223 = vadd.f32 %v142, %v207
    %v224 = vadd.f32 %v144, %v208
    %v225 = vadd.f32 %v147, %v209
    %v226 = vadd.f32 %v149, %v210
    %v227 = vadd.f32 %v152, %v211
    %v228 = vadd.f32 %v154, %v212
    %v229 = vadd.f32 %v157, %v213
    %v230 = vadd.f32 %v159, %v214
    %v231 = vadd.f32 %v162, %v215
    %v232 = vadd.f32 %v164, %v216
    %v233 = vadd.f32 %v167, %v217
    %v234 = vadd.f32 %v169, %v218
    %v235 = vmul.f32 %v219, 0.7978846
    %v236 = vmul.f32 %v220, 0.7978846
    %v237 = vmul.f32 %v221, 0.7978846
    %v238 = vmul.f32 %v222, 0.7978846
    %v239 = vmul.f32 %v223, 0.7978846
    %v240 = vmul.f32 %v224, 0.7978846
    %v241 = vmul.f32 %v225, 0.7978846
    %v242 = vmul.f32 %v226, 0.7978846
    %v243 = vmul.f32 %v227, 0.7978846
    %v244 = vmul.f32 %v228, 0.7978846
    %v245 = vmul.f32 %v229, 0.7978846
    %v246 = vmul.f32 %v230, 0.7978846
    %v247 = vmul.f32 %v231, 0.7978846
    %v248 = vmul.f32 %v232, 0.7978846
    %v249 = vmul.f32 %v233, 0.7978846
    %v250 = vmul.f32 %v234, 0.7978846
    %v251 = vtanh.pop %v235
    %v252 = vtanh.pop %v236
    %v253 = vtanh.pop %v237
    %v254 = vtanh.pop %v238
    %v255 = vtanh.pop %v239
    %v256 = vtanh.pop %v240
    %v257 = vtanh.pop %v241
    %v258 = vtanh.pop %v242
    %v259 = vtanh.pop %v243
    %v260 = vtanh.pop %v244
    %v261 = vtanh.pop %v245
    %v262 = vtanh.pop %v246
    %v263 = vtanh.pop %v247
    %v264 = vtanh.pop %v248
    %v265 = vtanh.pop %v249
    %v266 = vtanh.pop %v250
    %v267 = vadd.f32 %v251, 1.0
    %v268 = vadd.f32 %v252, 1.0
    %v269 = vadd.f32 %v253, 1.0
    %v270 = vadd.f32 %v254, 1.0
    %v271 = vadd.f32 %v255, 1.0
    %v272 = vadd.f32 %v256, 1.0
    %v273 = vadd.f32 %v257, 1.0
    %v274 = vadd.f32 %v258, 1.0
    %v275 = vadd.f32 %v259, 1.0
    %v276 = vadd.f32 %v260, 1.0
    %v277 = vadd.f32 %v261, 1.0
    %v278 = vadd.f32 %v262, 1.0
    %v279 = vadd.f32 %v263, 1.0
    %v280 = vadd.f32 %v264, 1.0
    %v281 = vadd.f32 %v265, 1.0
    %v282 = vadd.f32 %v266, 1.0
    %v283 = vmul.f32 %v267, 0.5
    %v284 = vmul.f32 %v268, 0.5
    %v285 = vmul.f32 %v269, 0.5
    %v286 = vmul.f32 %v270, 0.5
    %v287 = vmul.f32 %v271, 0.5
    %v288 = vmul.f32 %v272, 0.5
    %v289 = vmul.f32 %v273, 0.5
    %v290 = vmul.f32 %v274, 0.5
    %v291 = vmul.f32 %v275, 0.5
    %v292 = vmul.f32 %v276, 0.5
    %v293 = vmul.f32 %v277, 0.5
    %v294 = vmul.f32 %v278, 0.5
    %v295 = vmul.f32 %v279, 0.5
    %v296 = vmul.f32 %v280, 0.5
    %v297 = vmul.f32 %v281, 0.5
    %v298 = vmul.f32 %v282, 0.5
    %v299 = vmul.f32 %v132, %v283
    %v300 = vmul.f32 %v134, %v284
    %v301 = vmul.f32 %v137, %v285
    %v302 = vmul.f32 %v139, %v286
    %v303 = vmul.f32 %v142, %v287
    %v304 = vmul.f32 %v144, %v288
    %v305 = vmul.f32 %v147, %v289
    %v306 = vmul.f32 %v149, %v290
    %v307 = vmul.f32 %v152, %v291
    %v308 = vmul.f32 %v154, %v292
    %v309 = vmul.f32 %v157, %v293
    %v310 = vmul.f32 %v159, %v294
    %v311 = vmul.f32 %v162, %v295
    %v312 = vmul.f32 %v164, %v296
    %v313 = vmul.f32 %v167, %v297
    %v314 = vmul.f32 %v169, %v298
    %vm315 = vcmask 261120
    %v316 = vsel %vm315, %v299, 0.0
    %v317 = vrot.slane %v316, 4
    %v318 = vadd.f32 %v316, %v317
    %v319 = vrot.slane %v318, 2
    %v320 = vadd.f32 %v318, %v319
    %v321 = vrot.slane %v320, 1
    %v322 = vadd.f32 %v320, %v321
    %v323 = vsel %vm315, %v300, 0.0
    %v324 = vrot.slane %v323, 4
    %v325 = vadd.f32 %v323, %v324
    %v326 = vrot.slane %v325, 2
    %v327 = vadd.f32 %v325, %v326
    %v328 = vrot.slane %v327, 1
    %v329 = vadd.f32 %v327, %v328
    %v330 = vsel %vm315, %v301, 0.0
    %v331 = vrot.slane %v330, 4
    %v332 = vadd.f32 %v330, %v331
    %v333 = vrot.slane %v332, 2
    %v334 = vadd.f32 %v332, %v333
    %v335 = vrot.slane %v334, 1
    %v336 = vadd.f32 %v334, %v335
    %v337 = vsel %vm315, %v302, 0.0
    %v338 = vrot.slane %v337, 4
    %v339 = vadd.f32 %v337, %v338
    %v340 = vrot.slane %v339, 2
    %v341 = vadd.f32 %v339, %v340
    %v342 = vrot.slane %v341, 1
    %v343 = vadd.f32 %v341, %v342
    %v344 = vsel %vm315, %v303, 0.0
    %v345 = vrot.slane %v344, 4
    %v346 = vadd.f32 %v344, %v345
    %v347 = vrot.slane %v346, 2
    %v348 = vadd.f32 %v346, %v347
    %v349 = vrot.slane %v348, 1
    %v350 = vadd.f32 %v348, %v349
    %v351 = vsel %vm315, %v304, 0.0
    %v352 = vrot.slane %v351, 4
    %v353 = vadd.f32 %v351, %v352
    %v354 = vrot.slane %v353, 2
    %v355 = vadd.f32 %v353, %v354
    %v356 = vrot.slane %v355, 1
    %v357 = vadd.f32 %v355, %v356
    %v358 = vsel %vm315, %v305, 0.0
    %v359 = vrot.slane %v358, 4
    %v360 = vadd.f32 %v358, %v359
    %v361 = vrot.slane %v360, 2
    %v362 = vadd.f32 %v360, %v361
    %v363 = vrot.slane %v362, 1
    %v364 = vadd.f32 %v362, %v363
    %v365 = vsel %vm315, %v306, 0.0
    %v366 = vrot.slane %v365, 4
    %v367 = vadd.f32 %v365, %v366
    %v368 = vrot.slane %v367, 2
    %v369 = vadd.f32 %v367, %v368
    %v370 = vrot.slane %v369, 1
    %v371 = vadd.f32 %v369, %v370
    %v372 = vsel %vm315, %v307, 0.0
    %v373 = vrot.slane %v372, 4
    %v374 = vadd.f32 %v372, %v373
    %v375 = vrot.slane %v374, 2
    %v376 = vadd.f32 %v374, %v375
    %v377 = vrot.slane %v376, 1
    %v378 = vadd.f32 %v376, %v377
    %v379 = vsel %vm315, %v308, 0.0
    %v380 = vrot.slane %v379, 4
    %v381 = vadd.f32 %v379, %v380
    %v382 = vrot.slane %v381, 2
    %v383 = vadd.f32 %v381, %v382
    %v384 = vrot.slane %v383, 1
    %v385 = vadd.f32 %v383, %v384
    %v386 = vsel %vm315, %v309, 0.0
    %v387 = vrot.slane %v386, 4
    %v388 = vadd.f32 %v386, %v387
    %v389 = vrot.slane %v388, 2
    %v390 = vadd.f32 %v388, %v389
    %v391 = vrot.slane %v390, 1
    %v392 = vadd.f32 %v390, %v391
    %v393 = vsel %vm315, %v310, 0.0
    %v394 = vrot.slane %v393, 4
    %v395 = vadd.f32 %v393, %v394
    %v396 = vrot.slane %v395, 2
    %v397 = vadd.f32 %v395, %v396
    %v398 = vrot.slane %v397, 1
    %v399 = vadd.f32 %v397, %v398
    %v400 = vsel %vm315, %v311, 0.0
    %v401 = vrot.slane %v400, 4
    %v402 = vadd.f32 %v400, %v401
    %v403 = vrot.slane %v402, 2
    %v404 = vadd.f32 %v402, %v403
    %v405 = vrot.slane %v404, 1
    %v406 = vadd.f32 %v404, %v405
    %v407 = vsel %vm315, %v312, 0.0
    %v408 = vrot.slane %v407, 4
    %v409 = vadd.f32 %v407, %v408
    %v410 = vrot.slane %v409, 2
    %v411 = vadd.f32 %v409, %v410
    %v412 = vrot.slane %v411, 1
    %v413 = vadd.f32 %v411, %v412
    %v414 = vsel %vm315, %v313, 0.0
    %v415 = vrot.slane %v414, 4
    %v416 = vadd.f32 %v414, %v415
    %v417 = vrot.slane %v416, 2
    %v418 = vadd.f32 %v416, %v417
    %v419 = vrot.slane %v418, 1
    %v420 = vadd.f32 %v418, %v419
    %v421 = vsel %vm315, %v314, 0.0
    %v422 = vrot.slane %v421, 4
    %v423 = vadd.f32 %v421, %v422
    %v424 = vrot.slane %v423, 2
    %v425 = vadd.f32 %v423, %v424
    %v426 = vrot.slane %v425, 1
    %v427 = vadd.f32 %v425, %v426
    %v428 = vld [vmem:[%s2] sm:$0xff]
    %v429 = vld [vmem:[%s2 + $0x8] sm:$0xff]
    %v430 = vld [vmem:[%s2 + $0x10] sm:$0xff]
    %v431 = vld [vmem:[%s2 + $0x18] sm:$0xff]
    %v432 = vld [vmem:[%s3] sm:$0x1]
    %v434 = vperm.slane %v432, 0
    %vm452 = vcmask 1041409
    %v453 = vsel %vm452, %v329, %v322
    %vm454 = vcmask 1042434
    %v455 = vsel %vm454, %v336, %v453
    %vm456 = vcmask 1043459
    %v457 = vsel %vm456, %v343, %v455
    %vm458 = vcmask 1044484
    %v459 = vsel %vm458, %v350, %v457
    %vm460 = vcmask 1045509
    %v461 = vsel %vm460, %v357, %v459
    %vm462 = vcmask 1046534
    %v463 = vsel %vm462, %v364, %v461
    %vm464 = vcmask 1047559
    %v465 = vsel %vm464, %v371, %v463
    %v466 = vsel %vm452, %v385, %v378
    %v467 = vsel %vm454, %v392, %v466
    %v468 = vsel %vm456, %v399, %v467
    %v469 = vsel %vm458, %v406, %v468
    %v470 = vsel %vm460, %v413, %v469
    %v471 = vsel %vm462, %v420, %v470
    %v472 = vsel %vm464, %v427, %v471
    %v473 = vsel %vm315, %v465, 0
    %v475 = vsel %vm315, %v472, 0
    %477 = vmatpush.msra.mxu0 0.0
    %478 = vmatpush.msra.mxu0 0.0
    %479 = vmatpush.msra.mxu0 0.0
    %480 = vmatpush.msra.mxu0 0.0
    %481 = vmatpush.msra.mxu0 0.0
    %482 = vmatpush.msra.mxu0 0.0
    %483 = vmatpush.msra.mxu0 0.0
    %484 = vmatpush.msra.mxu0 0.0
    %485 = vmatpush.msra.mxu0 0.0
    %486 = vmatpush.msra.mxu0 0.0
    %487 = vmatpush.msra.mxu0 0.0
    %488 = vmatpush.msra.mxu0 0.0
    %489 = vmatpush.msra.mxu0 %v431
    %490 = vmatpush.msra.mxu0 %v430
    %491 = vmatpush.msra.mxu0 %v429
    %492 = vmatpush.msra.mxu0 %v428
    %493 = vmatmul.f32.gmra.mxu0 %v473
    %v494 = vpop.f32.mrf.mxu0
    %v495 = vadd.f32 %v434, %v494
    %496 = vmatmul.f32.gmra.mxu0 %v475
    %v497 = vpop.f32.mrf.mxu0
    %v498 = vadd.f32 %v434, %v497
    %499 = vdwg.mxu0
    %500 = vst [vmem:[#allocation5] sm:$0xff] %v495
    %501 = vst [vmem:[#allocation5 + $0x8] sm:$0xff] %v498
    // Predicated region
    $region22: #{tpu_custom_call.1} parent=1 // pred_check
      _
    $region23: #{tpu_custom_call.1} parent=1 // pred_check_branch
      %503 = sbr.rel (0) target = $region25
    $region24: #{tpu_custom_call.1} parent=1 // pred_region
      %505 = vsyncadd [#allocation4], 0
      %s506 = sshll.u32 [#allocation5], 4
      %s507 = int_to_ptr.vmem [resolvable:$true] %s506
      %s508 = sshll.u32 %s4, 4
      %s509 = int_to_ptr.hbm [resolvable:$true] %s508
      %514 = dma.vmem_to_hbm [thread:$0]  %s507, 256, %s509, [#allocation4], 128, 128, 8
    $region25: #{tpu_custom_call.1} parent=1 // pred_fallthru
      _
    // Predicated region
    $region26: #{tpu_custom_call.1} parent=1 // pred_check
      _
    $region27: #{tpu_custom_call.1} parent=1 // pred_check_branch
      %516 = sbr.rel (0) target = $region29
    $region28: #{tpu_custom_call.1} parent=1 // pred_region
      %518 = dma.done [#allocation4], 256
    $region29: #{tpu_custom_call.1} parent=1 // pred_fallthru
      _
    %519 = vsyncpa [#allocation3], 1
    %520 = vsyncpa [#allocation4], 1

</llo_original>
